<compile_context>
chip_gen: v5e
topology: v5e:2x2
jax: 0.10.0
libtpu: 0.0.40
codegen_flags: <defaults>
</compile_context>

<pallas_src>
import numpy as np
import jax
import jax.numpy as jnp
from jax.experimental import pallas as pl
from jax.experimental.pallas import tpu as pltpu

NUM_VIEWS = 4          # point_transform uses self.views[:4]
TRANS = -1.4
_LANE = 128
_MAX_TILE_N = 32768    # lane tile target (multiple of 128); ~1-2 MiB payload / step
_MAX_BATCH_TILE = 32   # cap on the in-kernel batch loop (bounds unrolled code size)


def make_views():
    """The (frozen) self.views parameter from P2P.__init__ — deterministic."""
    v = np.array(
        [
            [[0 * np.pi / 2, 0, np.pi / 2], [0, 0, TRANS]],
            [[1 * np.pi / 2, 0, np.pi / 2], [0, 0, TRANS]],
            [[2 * np.pi / 2, 0, np.pi / 2], [0, 0, TRANS]],
            [[3 * np.pi / 2, 0, np.pi / 2], [0, 0, TRANS]],
            [[5 * np.pi / 4, -np.pi / 4, np.pi / 2], [0, 0, TRANS]],
            [[5 * np.pi / 4, np.pi / 4, np.pi / 2], [0, 0, TRANS]],
            [[7 * np.pi / 4, -np.pi / 4, np.pi / 2], [0, 0, TRANS]],
            [[7 * np.pi / 4, np.pi / 4, np.pi / 2], [0, 0, TRANS]],
            [[0, -np.pi / 2, np.pi / 2], [0, 0, TRANS]],
            [[0, np.pi / 2, np.pi / 2], [0, 0, TRANS]],
        ],
        dtype=np.float32,
    )
    return jnp.asarray(v)  # [10, 2, 3]


def euler2mat(angle):
    """angle: [b, 3] -> rotmat: [b, 3, 3]  (same math as the torch version)."""
    x, y, z = angle[:, 0], angle[:, 1], angle[:, 2]
    zero = jnp.zeros_like(z)
    one = jnp.ones_like(z)

    cosz, sinz = jnp.cos(z), jnp.sin(z)
    zmat = jnp.stack(
        [cosz, -sinz, zero, sinz, cosz, zero, zero, zero, one], axis=1
    ).reshape(-1, 3, 3)

    cosy, siny = jnp.cos(y), jnp.sin(y)
    ymat = jnp.stack(
        [cosy, zero, siny, zero, one, zero, -siny, zero, cosy], axis=1
    ).reshape(-1, 3, 3)

    cosx, sinx = jnp.cos(x), jnp.sin(x)
    xmat = jnp.stack(
        [one, zero, zero, zero, cosx, -sinx, zero, sinx, cosx], axis=1
    ).reshape(-1, 3, 3)

    return xmat @ ymat @ zmat


# ----------------------------- Pallas kernel ---------------------------------
def _point_transform_kernel(pts_ref, tbl_ref, out_ref):
    # pts_ref: [Bt, 3, TILE_N]   Bt batches of points (coords-major, lane-dense)
    # tbl_ref: [12, 4]           row r = v*3 + j: cols 0..2 = euler2mat(angle_v)[j, :],
    #                            col 3 = translation_v[j]
    # out_ref: [Bt, 12, TILE_N]  row r = v*3 + j
    #
    # torch: out[n, j] = sum_i pts[n, i] * rot_mat[i, j] - t[j] with
    #        rot_mat = euler2mat(angle).T  =>  out[j, :] = sum_i E[j, i] * pts[i, :] - t[j]
    # Done as VPU broadcast multiply-adds (no MXU, no in-kernel transpose).
    tbl = tbl_ref[...]                      # [12, 4]
    rx, ry, rz = tbl[:, 0:1], tbl[:, 1:2], tbl[:, 2:3]   # [12, 1] (lane-broadcast)
    t = tbl[:, 3:4]                                      # [12, 1]
    bt = pts_ref.shape[0]
    for i in range(bt):                     # short static loop (bt <= _MAX_BATCH_TILE)
        x = pts_ref[i, 0:1, :]              # [1, TILE_N] (sublane-broadcast)
        y = pts_ref[i, 1:2, :]
        z = pts_ref[i, 2:3, :]
        # one contiguous, lane-dense [12, TILE_N] store per batch entry
        out_ref[i] = (rx * x + ry * y + rz * z - t).astype(out_ref.dtype)


# ----------------------------- tiling policy ---------------------------------
def _round_up(x, m):
    return ((x + m - 1) // m) * m


def _largest_divisor_leq(n, cap):
    cap = max(1, min(n, cap))
    for d in range(cap, 0, -1):
        if n % d == 0:
            return d
    return 1


def _choose_tiling(batch, n, max_tile_n):
    """Return (n_pad, tile_n, n_tiles, bt): lane padding, lane tile, #lane tiles,
    batch tile.  All lane quantities are multiples of 128; bt divides batch."""
    max_tile_n = max(_LANE, _round_up(max_tile_n, _LANE))
    n128 = _round_up(max(n, 1), _LANE)
    if n128 <= max_tile_n:
        tile_n, n_tiles = n128, 1
    else:
        # pad by at most ~128 lanes per tile (not up to a whole max-tile)
        n_tiles = pl.cdiv(n128, max_tile_n)
        tile_n = _round_up(pl.cdiv(n128, n_tiles), _LANE)
    n_pad = tile_n * n_tiles

    # batch tile: amortize the per-step pipeline overhead for small point clouds
    if n_tiles == 1:
        bt_cap = max(1, min(_MAX_BATCH_TILE, max_tile_n // tile_n))
        bt = _largest_divisor_leq(batch, bt_cap)
    else:
        bt = 1

    # guarantee >= 2 grid steps when possible (keeps both v7x TensorCores busy)
    if (batch // bt) * n_tiles == 1:
        if batch > 1:                      # split on batch first
            bt = _largest_divisor_leq(batch, batch // 2)
        elif n_pad // _LANE >= 2:          # B == 1: split on lanes
            m = n_pad // _LANE
            tile_n = _largest_divisor_leq(m, m // 2) * _LANE
            n_tiles = n_pad // tile_n
    return n_pad, tile_n, n_tiles, bt


# ------------------------------- fast path ------------------------------------
def point_transform_coords_major(points_cm, views, *, out_dtype=jnp.float32,
                                 max_tile_n=_MAX_TILE_N):
    """Fast path.  points_cm: [B, 3, N] float32 (coords-major, lane-dense).
    Returns [B*4, 3, N] coords-major, matching P2P.point_transform semantics
    (repeat_interleave over the first 4 views, points @ rot_mat - translation).
    Pass out_dtype=jnp.bfloat16 to halve the write traffic if downstream tolerates it."""
    B, _, N = points_cm.shape
    V = NUM_VIEWS
    n_pad, tile_n, n_tiles, bt = _choose_tiling(B, N, max_tile_n)

    views4 = views[:V]                              # [4, 2, 3]
    angle = views4[:, 0, :]                         # [4, 3]
    E = euler2mat(angle)                            # [4, 3, 3]  (no .T — cancels in-kernel)
    rot_tbl = E.reshape(V * 3, 3)                   # [12, 3]; row v*3+j = E_v[j, :]
    trans_tbl = views4[:, 1, :].reshape(V * 3, 1)   # [12, 1]; row v*3+j = t_v[j]
    tbl = jnp.concatenate([rot_tbl, trans_tbl], axis=1).astype(jnp.float32)  # [12, 4]

    pts = points_cm.astype(jnp.float32)
    if n_pad != N:
        pts = jnp.pad(pts, ((0, 0), (0, 0), (0, n_pad - N)))

    # memory-bound cost hint (6 flops per output element, 15 words/point of HBM)
    cost = pl.CostEstimate(
        flops=6 * 12 * B * n_pad,
        transcendentals=0,
        bytes_accessed=(3 * 4 + 12 * jnp.dtype(out_dtype).itemsize) * B * n_pad,
    )

    # double-buffered VMEM footprint (3->8 / 12->16 sublane padding); only set an
    # explicit limit if the caller asked for unusually large tiles.
    vmem_est = 2 * bt * tile_n * 4 * (8 + 16) + (1 << 16)
    cp_kwargs = dict(dimension_semantics=("parallel", "parallel"))
    if vmem_est > (12 << 20):
        cp_kwargs["vmem_limit_bytes"] = min(2 * vmem_est, 64 << 20)

    out = pl.pallas_call(
        _point_transform_kernel,
        out_shape=jax.ShapeDtypeStruct((B, V * 3, n_pad), out_dtype),
        grid_spec=pltpu.PrefetchScalarGridSpec(
            num_scalar_prefetch=0,
            grid=(B // bt, n_tiles),
            in_specs=[
                pl.BlockSpec((bt, 3, tile_n), lambda b, nt: (b, 0, nt)),
                pl.BlockSpec((V * 3, 4), lambda b, nt: (0, 0)),
            ],
            out_specs=pl.BlockSpec((bt, V * 3, tile_n), lambda b, nt: (b, 0, nt)),
        ),
        compiler_params=pltpu.CompilerParams(**cp_kwargs),
        cost_estimate=cost,
    )(pts, tbl)

    # [B, 12, n_pad] -> [B*V, 3, n_pad] (row v*3+j splits into (view, coord)),
    # drop the lane padding (padded lanes hold -t, not zeros).
    out = out.reshape(B * V, 3, n_pad)
    if n_pad != N:
        out = out[:, :, :N]
    return out


def point_transform(points, views):
    """points: [B, N, 3] float32 -> [B*4, N, 3], matching P2P.point_transform.
    Only the boundary transposes live here; the kernel is coords-major.
    Downstream consumers should prefer point_transform_coords_major — the two
    jnp.transpose HBM passes here cost ~2-3x the kernel's own traffic."""
    pts_cm = jnp.transpose(points, (0, 2, 1))                # [B, 3, N]
    out_cm = point_transform_coords_major(pts_cm, views)     # [B*V, 3, N]
    return jnp.transpose(out_cm, (0, 2, 1))                  # [B*V, N, 3]


def p2p_forward_geometry(pc, original_pc, views):
    """Implements the geometric front-end of P2P.forward:
       original_pc = repeat_interleave(original_pc, num_views, dim=0)
       pc = point_transform(pc)
    The downstream ProjEnc / interpolate / mosaic / base_model stages are
    external modules (see TODO at top).
    Note: the materialized repeat is kept only for API parity with the torch
    module; a fused downstream stage should instead index original_pc[row // 4]
    and skip this extra ~48 B/point of HBM traffic."""
    original_pc_rep = jnp.repeat(original_pc, NUM_VIEWS, axis=0)  # [B*V, N, 3]
    pc_t = point_transform(pc, views)                             # [B*V, N, 3]
    return pc_t, original_pc_rep


# ------------------------------- reference -----------------------------------
def point_transform_ref(points, views):
    B, N, _ = points.shape
    V = NUM_VIEWS
    views4 = views[:V]
    angle = views4[:, 0, :]
    rot_mat = jnp.transpose(euler2mat(angle), (0, 2, 1))          # [4, 3, 3]
    translation = views4[:, 1, :][:, None, :]                     # [4, 1, 3]
    pts = jnp.repeat(points, V, axis=0)                           # [B*V, N, 3]
    rot = jnp.tile(rot_mat, (B, 1, 1))                            # [B*V, 3, 3]
    tr = jnp.tile(translation, (B, 1, 1))                         # [B*V, 1, 3]
    return jnp.matmul(pts, rot) - tr


if __name__ == "__main__":
    key = jax.random.PRNGKey(0)
    k1, k2, k3, k4 = jax.random.split(key, 4)
    views = make_views()

    # Case 1: API-compat path, B=2, N=128 (single lane tile; batch-split for >=2 steps)
    B, N = 2, 128
    pc = jax.random.normal(k1, (B, N, 3), dtype=jnp.float32)
    original_pc = jax.random.normal(k2, (B, N, 3), dtype=jnp.float32)
    pc_out, opc_rep = p2p_forward_geometry(pc, original_pc, views)
    pc_out = jax.block_until_ready(pc_out)
    opc_rep = jax.block_until_ready(opc_rep)
    ref = point_transform_ref(pc, views)
    assert pc_out.shape == (B * NUM_VIEWS, N, 3)
    assert opc_rep.shape == (B * NUM_VIEWS, N, 3)
    np.testing.assert_allclose(np.asarray(pc_out), np.asarray(ref),
                               rtol=1e-5, atol=1e-5)

    # Case 2: non-128-aligned N with batch tiling (pad/slice path), B=4, N=200
    B2, N2 = 4, 200
    pc2 = jax.random.normal(k3, (B2, N2, 3), dtype=jnp.float32)
    out2 = jax.block_until_ready(point_transform(pc2, views))
    ref2 = point_transform_ref(pc2, views)
    np.testing.assert_allclose(np.asarray(out2), np.asarray(ref2),
                               rtol=1e-5, atol=1e-5)

    # Case 3: multi lane-tile path exercised via a small max_tile_n (B=1, N=520)
    B3, N3 = 1, 520
    pc3 = jax.random.normal(k4, (B3, N3, 3), dtype=jnp.float32)
    pc3_cm = jnp.transpose(pc3, (0, 2, 1))                        # [1, 3, 520]
    out3_cm = point_transform_coords_major(pc3_cm, views, max_tile_n=256)
    out3 = jax.block_until_ready(jnp.transpose(out3_cm, (0, 2, 1)))
    ref3 = point_transform_ref(pc3, views)
    np.testing.assert_allclose(np.asarray(out3), np.asarray(ref3),
                               rtol=1e-5, atol=1e-5)

    print("KERNEL_OK")
</pallas_src>

<mosaic_0001>
module attributes {stable_mosaic.version = 11 : i64} {
  func.func @_point_transform_kernel(%arg0: i32, %arg1: i32, %arg2: memref<1x3x128xf32, #tpu.memory_space<vmem>>, %arg3: memref<12x4xf32, #tpu.memory_space<vmem>>, %arg4: memref<1x12x128xf32, #tpu.memory_space<vmem>>) attributes {dimension_semantics = [#tpu.dimension_semantics<parallel>, #tpu.dimension_semantics<parallel>], iteration_bounds = array<i64: 2, 1>, scalar_prefetch = 0 : i64, scratch_operands = 0 : i64, tpu.core_type = #tpu.core_type<tc>, window_params = [{transform_indices = @transform_0, window_bounds = array<i64: 1, 3, 128>}, {pipeline_mode = #tpu.pipeline_mode<synchronous>, transform_indices = @transform_1, window_bounds = array<i64: 12, 4>}, {transform_indices = @transform_2, window_bounds = array<i64: 1, 12, 128>}]} {
    %c0 = arith.constant 0 : index
    %c0_0 = arith.constant 0 : index
    %0 = vector.load %arg3[%c0, %c0_0] : memref<12x4xf32, #tpu.memory_space<vmem>>, vector<12x4xf32>
    %1 = vector.extract_strided_slice %0 {offsets = [0, 0], sizes = [12, 1], strides = [1, 1]} : vector<12x4xf32> to vector<12x1xf32>
    %2 = vector.extract_strided_slice %0 {offsets = [0, 1], sizes = [12, 1], strides = [1, 1]} : vector<12x4xf32> to vector<12x1xf32>
    %3 = vector.extract_strided_slice %0 {offsets = [0, 2], sizes = [12, 1], strides = [1, 1]} : vector<12x4xf32> to vector<12x1xf32>
    %4 = vector.extract_strided_slice %0 {offsets = [0, 3], sizes = [12, 1], strides = [1, 1]} : vector<12x4xf32> to vector<12x1xf32>
    %c0_1 = arith.constant 0 : index
    %c0_2 = arith.constant 0 : index
    %c0_3 = arith.constant 0 : index
    %5 = vector.load %arg2[%c0_1, %c0_2, %c0_3] : memref<1x3x128xf32, #tpu.memory_space<vmem>>, vector<1x1x128xf32>
    %6 = vector.shape_cast %5 : vector<1x1x128xf32> to vector<1x128xf32>
    %c0_4 = arith.constant 0 : index
    %c1 = arith.constant 1 : index
    %c0_5 = arith.constant 0 : index
    %7 = vector.load %arg2[%c0_4, %c1, %c0_5] : memref<1x3x128xf32, #tpu.memory_space<vmem>>, vector<1x1x128xf32>
    %8 = vector.shape_cast %7 : vector<1x1x128xf32> to vector<1x128xf32>
    %c0_6 = arith.constant 0 : index
    %c2 = arith.constant 2 : index
    %c0_7 = arith.constant 0 : index
    %9 = vector.load %arg2[%c0_6, %c2, %c0_7] : memref<1x3x128xf32, #tpu.memory_space<vmem>>, vector<1x1x128xf32>
    %10 = vector.shape_cast %9 : vector<1x1x128xf32> to vector<1x128xf32>
    %11 = vector.broadcast %1 : vector<12x1xf32> to vector<12x128xf32>
    %12 = vector.broadcast %6 : vector<1x128xf32> to vector<12x128xf32>
    %13 = arith.mulf %11, %12 : vector<12x128xf32>
    %14 = vector.broadcast %2 : vector<12x1xf32> to vector<12x128xf32>
    %15 = vector.broadcast %8 : vector<1x128xf32> to vector<12x128xf32>
    %16 = arith.mulf %14, %15 : vector<12x128xf32>
    %17 = arith.addf %13, %16 : vector<12x128xf32>
    %18 = vector.broadcast %3 : vector<12x1xf32> to vector<12x128xf32>
    %19 = vector.broadcast %10 : vector<1x128xf32> to vector<12x128xf32>
    %20 = arith.mulf %18, %19 : vector<12x128xf32>
    %21 = arith.addf %17, %20 : vector<12x128xf32>
    %22 = vector.broadcast %4 : vector<12x1xf32> to vector<12x128xf32>
    %23 = arith.subf %21, %22 : vector<12x128xf32>
    %c0_8 = arith.constant 0 : index
    %c0_9 = arith.constant 0 : index
    %c0_10 = arith.constant 0 : index
    %24 = vector.load %arg4[%c0_8, %c0_9, %c0_10] : memref<1x12x128xf32, #tpu.memory_space<vmem>>, vector<1x12x128xf32>
    %25 = vector.shape_cast %24 : vector<1x12x128xf32> to vector<12x128xf32>
    %26 = vector.shape_cast %23 : vector<12x128xf32> to vector<1x12x128xf32>
    tpu.vector_store %arg4[%c0_8, %c0_9, %c0_10], %26 {strides = array<i32>} : memref<1x12x128xf32, #tpu.memory_space<vmem>>, vector<1x12x128xf32>,
    return
  }
  func.func @transform_0(%arg0: i32, %arg1: i32) -> (i32, i32, i32) {
    %c0_i32 = arith.constant 0 : i32
    %c0_i32_0 = arith.constant 0 : i32
    return %arg0, %c0_i32, %arg1 : i32, i32, i32
  }
  func.func @transform_1(%arg0: i32, %arg1: i32) -> (i32, i32) {
    %c0_i32 = arith.constant 0 : i32
    %c0_i32_0 = arith.constant 0 : i32
    %c0_i32_1 = arith.constant 0 : i32
    return %c0_i32, %c0_i32_0 : i32, i32
  }
  func.func @transform_2(%arg0: i32, %arg1: i32) -> (i32, i32, i32) {
    %c0_i32 = arith.constant 0 : i32
    %c0_i32_0 = arith.constant 0 : i32
    return %arg0, %c0_i32, %arg1 : i32, i32, i32
  }
}

</mosaic_0001>

<llo_original>
// kernel: tpu_custom_call.1
$region0: #{tpu_custom_call.1}
  #allocation0 [shape = 'u32[]', space=smem, size = 0x4, offset = 0x4, fixed_abs, tag = 'smem constant byte address 0x4 - core index']
  #allocation1 [shape = 'u32[72,128]{1,0:T(1,128)}', space=vmem, size = 0x9000, scoped, tag = 'internal scratch']
  %s0 = inlined_call_operand.vmem [shape: f32[2,3,128], index: 0, kind: input, shape index: {}]
  %s1 = inlined_call_operand.vmem [shape: f32[12,4], index: 1, kind: input, shape index: {}]
  %s2 = inlined_call_operand.vmem [shape: f32[2,12,128], index: 2, kind: output, shape index: {}]
  %s3 = sld [smem:[#allocation0]]
  $region41: #{tpu_custom_call.1} parent=0
    _
  %s5 = ssub.s32 1, %s3
  %s6 = scalar_select 0, %s5, %s3
  loop: start=0, step=1, limit=4
  $region2: #{tpu_custom_call.1} parent=0 // loop_pre_header
    _
  $region3: #{tpu_custom_call.1} parent=0 // loop_header
    %s8 = sphi 0, %s12
    %p9 = scmp.ge.s32.totalorder %s8, 4
    %s15 = sphi 0, %s27
    %s16 = sphi 0, %s23
    %s17 = sphi 0, %s15
    %s18 = sphi 0, %s16
    %s19 = sphi 0, %s17
    %s20 = sphi 0, %s18
    %s32 = sphi 0, %s34
    %s35 = sphi 0, %s32
    %s36 = sphi 0, %s35
    %s52 = sphi 0, %s36
    %s56 = sphi 0, %s56
    %s58 = sphi 0, %s56
    %s59 = sphi 0, %s58
    %s73 = sphi 0, %s59
    %s81 = sphi 0, %s83
    %s84 = sphi 0, %s81
    %s85 = sphi 0, %s84
    %s101 = sphi 0, %s85
  $region4: #{tpu_custom_call.1} parent=0 // loop_header_branch
    %11 = sbr.rel (%p9) target = $region8
  $region5: #{tpu_custom_call.1} parent=0 // loop_body
    %s13 = ssub.s32 %s8, 1
    %s14 = ssub.s32 %s8, 2
    %s21 = sadd.s32 1, %s16
    %p22 = scmp.ge.s32.totalorder %s21, 1
    %s23 = scalar_select %p22, 0, %s21
    %s24 = sadd.s32 1, %s15
    %s25 = scalar_select %p22, %s24, %s15
    %p26 = scmp.ge.s32.totalorder %s25, 2
    %s27 = scalar_select %p26, 0, %s25
    %s28 = ssub.s32 %s15, %s27
    %s29 = ssub.s32 %s16, %s23
    %s30 = sor.u32 %s28, %s29
    %p31 = scmp.eq.s32.totalorder %s30, 0
    %s33 = sadd.s32 %s32, 1
    %s34 = scalar_select %p31, %s32, %s33
    %p37 = pneg %p31
    %p38 = scmp.eq.s32.totalorder %s8, 1
    %p39 = por %p37, %p38
    %p40 = scmp.ne.s32.totalorder %s32, %s35
    %p41 = scmp.eq.s32.totalorder %s8, 0
    %p42 = por %p40, %p41
    %p43 = scmp.ne.s32.totalorder %s32, %s35
    %p44 = scmp.eq.s32.totalorder %s13, 1
    %p45 = por %p43, %p44
    %p46 = scmp.ne.s32.totalorder %s35, %s36
    %p47 = scmp.eq.s32.totalorder %s13, 0
    %p48 = por %p46, %p47
    %p49 = scmp.ne.s32.totalorder %s35, %s36
    %p50 = scmp.eq.s32.totalorder %s14, 1
    %p51 = por %p49, %p50
    %p53 = scmp.ne.s32.totalorder %s36, %s52
    %p54 = scmp.eq.s32.totalorder %s14, 0
    %p55 = por %p53, %p54
    %s57 = sadd.s32 %s56, 1
    %p60 = scmp.eq.s32.totalorder %s8, 1
    %p61 = scmp.ne.s32.totalorder %s56, %s58
    %p62 = scmp.eq.s32.totalorder %s8, 0
    %p63 = por %p61, %p62
    %p64 = scmp.ne.s32.totalorder %s56, %s58
    %p65 = scmp.eq.s32.totalorder %s13, 1
    %p66 = por %p64, %p65
    %p67 = scmp.ne.s32.totalorder %s58, %s59
    %p68 = scmp.eq.s32.totalorder %s13, 0
    %p69 = por %p67, %p68
    %p70 = scmp.ne.s32.totalorder %s58, %s59
    %p71 = scmp.eq.s32.totalorder %s14, 1
    %p72 = por %p70, %p71
    %p74 = scmp.ne.s32.totalorder %s59, %s73
    %p75 = scmp.eq.s32.totalorder %s14, 0
    %p76 = por %p74, %p75
    %s77 = ssub.s32 %s15, %s27
    %s78 = ssub.s32 %s16, %s23
    %s79 = sor.u32 %s77, %s78
    %p80 = scmp.eq.s32.totalorder %s79, 0
    %s82 = sadd.s32 %s81, 1
    %s83 = scalar_select %p80, %s81, %s82
    %p86 = pneg %p80
    %p87 = scmp.eq.s32.totalorder %s8, 1
    %p88 = por %p86, %p87
    %p89 = scmp.ne.s32.totalorder %s81, %s84
    %p90 = scmp.eq.s32.totalorder %s8, 0
    %p91 = por %p89, %p90
    %p92 = scmp.ne.s32.totalorder %s81, %s84
    %p93 = scmp.eq.s32.totalorder %s13, 1
    %p94 = por %p92, %p93
    %p95 = scmp.ne.s32.totalorder %s84, %s85
    %p96 = scmp.eq.s32.totalorder %s13, 0
    %p97 = por %p95, %p96
    %p98 = scmp.ne.s32.totalorder %s84, %s85
    %p99 = scmp.eq.s32.totalorder %s14, 1
    %p100 = por %p98, %p99
    %p102 = scmp.ne.s32.totalorder %s85, %s101
    %p103 = scmp.eq.s32.totalorder %s14, 0
    %p104 = por %p102, %p103
    %p105 = scmp.le.s32.totalorder 1, %s8
    %p106 = scmp.lt.s32.totalorder %s8, 3
    %p107 = pnand %p105, %p106
    %p108 = pneg %p107
    // Predicated region
    $region9: #{tpu_custom_call.1} parent=5 // pred_check
      _
    $region10: #{tpu_custom_call.1} parent=5 // pred_check_branch
      %110 = sbr.rel (%p107) target = $region12
    $region11: #{tpu_custom_call.1} parent=5 // pred_region
      %s111 = ssub.s32 %s8, 1
      // Predicated region
      $region13: #{tpu_custom_call.1} parent=11 // pred_check
        %p112 = pneg %p69
      $region14: #{tpu_custom_call.1} parent=11 // pred_check_branch
        %114 = sbr.rel (%p112) target = $region16
      $region15: #{tpu_custom_call.1} parent=11 // pred_region
        _
      $region16: #{tpu_custom_call.1} parent=11 // pred_fallthru
        _
    $region12: #{tpu_custom_call.1} parent=5 // pred_fallthru
      _
    %p115 = scmp.lt.s32.totalorder %s8, 2
    // Predicated region
    $region17: #{tpu_custom_call.1} parent=5 // pred_check
      %p116 = pneg %p115
    $region18: #{tpu_custom_call.1} parent=5 // pred_check_branch
      %118 = sbr.rel (%p116) target = $region20
    $region19: #{tpu_custom_call.1} parent=5 // pred_region
      // Predicated region
      $region21: #{tpu_custom_call.1} parent=19 // pred_check
        %p119 = pneg %p42
      $region22: #{tpu_custom_call.1} parent=19 // pred_check_branch
        %121 = sbr.rel (%p119) target = $region24
      $region23: #{tpu_custom_call.1} parent=19 // pred_region
        %p122 = scmp.lt.s32.totalorder %s15, 1
        %s123 = scalar_select %p122, %s15, 1
        %p124 = scmp.lt.s32.totalorder %s16, 0
        %s125 = scalar_select %p124, %s16, 0
        %s126 = sadd.s32 %s125, %s123
        %s127 = smul.addr %s126, 4
        %s128 = scalar_lea.vmem %s0, %s127
      $region24: #{tpu_custom_call.1} parent=19 // pred_fallthru
        _
    $region20: #{tpu_custom_call.1} parent=5 // pred_fallthru
      _
    %p129 = scmp.le.s32.totalorder 1, %s8
    %p130 = scmp.lt.s32.totalorder %s8, 3
    %p131 = pnand %p129, %p130
    %p132 = pneg %p131
    // Predicated region
    $region25: #{tpu_custom_call.1} parent=5 // pred_check
      _
    $region26: #{tpu_custom_call.1} parent=5 // pred_check_branch
      %134 = sbr.rel (%p131) target = $region28
    $region27: #{tpu_custom_call.1} parent=5 // pred_region
      %s135 = ssub.s32 %s8, 1
      %p136 = scmp.lt.s32.totalorder %s17, 1
      %s137 = scalar_select %p136, %s17, 1
      %p138 = scmp.lt.s32.totalorder %s18, 0
      %s139 = scalar_select %p138, %s18, 0
      %s140 = sadd.s32 %s139, %s137
      %s141 = smul.addr %s140, 4
      %s142 = scalar_lea.vmem %s0, %s141
      %p143 = pneg %p48
      %p144 = pneg %p45
      %p145 = pneg %p69
      %p146 = pneg %p66
      %p147 = pneg %p97
      %p148 = pneg %p94
      %p149 = scmp.lt.s32.totalorder %s17, 1
      %s150 = scalar_select %p149, %s17, 1
      %p151 = scmp.lt.s32.totalorder %s18, 0
      %s152 = scalar_select %p151, %s18, 0
      %s153 = smul.addr %s150, 2
      %s154 = sadd.s32 %s152, %s153
      %s155 = smul.addr %s154, 8
      %s156 = scalar_lea.vmem %s2, %s155
      %p157 = scmp.lt.s32.totalorder %s17, 1
      %s158 = scalar_select %p157, %s17, 1
      %p159 = scmp.lt.s32.totalorder %s18, 0
      %s160 = scalar_select %p159, %s18, 0
      %s161 = sadd.s32 %s160, %s158
      %s162 = smul.addr %s161, 4
      %s163 = scalar_lea.vmem %s0, %s162
      %p164 = scmp.lt.s32.totalorder %s17, 1
      %s165 = scalar_select %p164, %s17, 1
      %p166 = scmp.lt.s32.totalorder %s18, 0
      %s167 = scalar_select %p166, %s18, 0
      %s168 = smul.addr %s165, 2
      %s169 = sadd.s32 %s167, %s168
      %s170 = smul.addr %s169, 8
      %s171 = scalar_lea.vmem %s2, %s170
      %v172 = vld [vmem:[%s1] sm:$0xff]
      %v173 = vld [vmem:[%s1 + $0x8] sm:$0xf]
      %v174 = vld [vmem:[%s163] sm:$0x1]
      %v175 = vld [vmem:[%s163 + $0x1] sm:$0x1]
      %v176 = vld [vmem:[%s163 + $0x2] sm:$0x1]
      %178 = vset.pattern.permute.xlu0 0
      %179 = vperm.xlu0 %178, %v172
      %v180 = vpop.permute.xlu0 %179
      %183 = vset.pattern.permute.xlu0 0
      %184 = vperm.xlu0 %183, %v173
      %v185 = vpop.permute.xlu0 %184
      %v187 = vperm.slane %v174, 0
      %v188 = vmul.f32 %v180, %v187
      %v189 = vmul.f32 %v185, %v187
      %190 = vset.pattern.permute.xlu0 1
      %191 = vperm.xlu0 %190, %v172
      %v192 = vpop.permute.xlu0 %191
      %194 = vset.pattern.permute.xlu0 1
      %195 = vperm.xlu0 %194, %v173
      %v196 = vpop.permute.xlu0 %195
      %v198 = vperm.slane %v175, 0
      %v199 = vmul.f32 %v192, %v198
      %v200 = vmul.f32 %v196, %v198
      %v201 = vadd.f32 %v188, %v199
      %v202 = vadd.f32 %v189, %v200
      %203 = vset.pattern.permute.xlu0 2
      %204 = vperm.xlu0 %203, %v172
      %v205 = vpop.permute.xlu0 %204
      %207 = vset.pattern.permute.xlu0 2
      %208 = vperm.xlu0 %207, %v173
      %v209 = vpop.permute.xlu0 %208
      %v211 = vperm.slane %v176, 0
      %v212 = vmul.f32 %v205, %v211
      %v213 = vmul.f32 %v209, %v211
      %v214 = vadd.f32 %v201, %v212
      %v215 = vadd.f32 %v202, %v213
      %216 = vset.pattern.permute.xlu0 3
      %217 = vperm.xlu0 %216, %v172
      %v218 = vpop.permute.xlu0 %217
      %220 = vset.pattern.permute.xlu0 3
      %221 = vperm.xlu0 %220, %v173
      %v222 = vpop.permute.xlu0 %221
      %v224 = vsub.f32 %v214, %v218
      %v225 = vsub.f32 %v215, %v222
      %226 = vst [vmem:[%s171] sm:$0xff] %v224
      %227 = vst [vmem:[%s171 + $0x8] sm:$0xf] %v225
      %p228 = scmp.lt.s32.totalorder %s17, 1
      %s229 = scalar_select %p228, %s17, 1
      %p230 = scmp.lt.s32.totalorder %s18, 0
      %s231 = scalar_select %p230, %s18, 0
      %s232 = smul.addr %s229, 2
      %s233 = sadd.s32 %s231, %s232
      %s234 = smul.addr %s233, 8
      %s235 = scalar_lea.vmem %s2, %s234
      // Predicated region
      $region29: #{tpu_custom_call.1} parent=27 // pred_check
        %p236 = pneg %p94
      $region30: #{tpu_custom_call.1} parent=27 // pred_check_branch
        %238 = sbr.rel (%p236) target = $region32
      $region31: #{tpu_custom_call.1} parent=27 // pred_region
        _
      $region32: #{tpu_custom_call.1} parent=27 // pred_fallthru
        _
    $region28: #{tpu_custom_call.1} parent=5 // pred_fallthru
      _
    %p239 = scmp.le.s32.totalorder 2, %s8
    // Predicated region
    $region33: #{tpu_custom_call.1} parent=5 // pred_check
      %p240 = pneg %p239
    $region34: #{tpu_custom_call.1} parent=5 // pred_check_branch
      %242 = sbr.rel (%p240) target = $region36
    $region35: #{tpu_custom_call.1} parent=5 // pred_region
      %s243 = ssub.s32 %s8, 2
      // Predicated region
      $region37: #{tpu_custom_call.1} parent=35 // pred_check
        %p244 = pneg %p100
      $region38: #{tpu_custom_call.1} parent=35 // pred_check_branch
        %246 = sbr.rel (%p244) target = $region40
      $region39: #{tpu_custom_call.1} parent=35 // pred_region
        %p247 = scmp.lt.s32.totalorder %s19, 1
        %s248 = scalar_select %p247, %s19, 1
        %p249 = scmp.lt.s32.totalorder %s20, 0
        %s250 = scalar_select %p249, %s20, 0
        %s251 = smul.addr %s248, 2
        %s252 = sadd.s32 %s250, %s251
        %s253 = smul.addr %s252, 8
        %s254 = scalar_lea.vmem %s2, %s253
      $region40: #{tpu_custom_call.1} parent=35 // pred_fallthru
        _
    $region36: #{tpu_custom_call.1} parent=5 // pred_fallthru
      _
  $region6: #{tpu_custom_call.1} parent=0 // loop_footer
    %s12 = sadd.s32 1, %s8
  $region7: #{tpu_custom_call.1} parent=0 // loop_footer_branch
    %7 = sbr.rel target = $region3
  $region8: #{tpu_custom_call.1} parent=0 // loop_exit
    _

</llo_original>
